<compile_context>
chip_gen: v5e
topology: v5e:2x2
jax: 0.10.0
libtpu: 0.0.40
codegen_flags: <defaults>
</compile_context>

<pallas_src>
import functools

import jax
import jax.numpy as jnp
from jax.experimental import pallas as pl
from jax.experimental.pallas import tpu as pltpu

PACK = 8  # logical batch rows packed per lane-row (8 * nbInputs=16 -> 128 lanes)


def _round_up(n, m):
    return ((n + m - 1) // m) * m


def mlp_kernel(x_ref, w1_ref, b1_ref, w2_ref, b2_ref, w3_ref, b3_ref, o_ref):
    """One batch tile of the fused, batch-in-lanes packed 3-layer MLP."""
    cd = w1_ref.dtype                      # matmul input dtype (f32 or bf16)
    x = x_ref[...].astype(cd)
    h = jnp.dot(x, w1_ref[...], preferred_element_type=jnp.float32) + b1_ref[...]
    h = jnp.maximum(h, 0.0)
    h = jnp.dot(h.astype(cd), w2_ref[...],
                preferred_element_type=jnp.float32) + b2_ref[...]
    h = jnp.maximum(h, 0.0)
    o = jnp.dot(h.astype(cd), w3_ref[...],
                preferred_element_type=jnp.float32) + b3_ref[...]
    o_ref[...] = o.astype(o_ref.dtype)


def pack_params(params, *, pack=PACK, compute_dtype=jnp.bfloat16):
    """Block-diagonal 'batch-in-lanes' packing of the per-layer parameters.

    W:(in,out) -> kron(I_pack, W):(pack*in, pack*out);  b:(1,out) -> (1, pack*out).
    Weights are stored in `compute_dtype` (bf16 default: single-pass MXU);
    biases stay f32 (added to the f32 accumulator).
    """
    def bd(w):
        return jnp.kron(jnp.eye(pack, dtype=w.dtype), w).astype(compute_dtype)

    def tb(b):
        return jnp.tile(b, (1, pack)).astype(jnp.float32)

    return dict(w1=bd(params["w1"]), b1=tb(params["b1"]),
                w2=bd(params["w2"]), b2=tb(params["b2"]),
                w3=bd(params["w3"]), b3=tb(params["b3"]))


@functools.partial(jax.jit, static_argnames=("tm",))
def net_forward(x, packed, *, tm=32768):
    """Batch-tiled, batch-in-lanes fused Pallas MLP.

    x: (batch, nbInputs) float32
    packed: output of pack_params(params)
    tm: target logical batch rows per grid step (rounded / capped internally).
    """
    batch, nb_in = x.shape
    kin, hid_p = packed["w1"].shape
    out_p = packed["w3"].shape[1]
    pack = kin // nb_in
    nb_out = out_p // pack

    # Tiny pad so batch is a multiple of the packing factor (no-op if already).
    pb = _round_up(batch, pack)
    if pb != batch:
        x = jnp.pad(x, ((0, pb - batch), (0, 0)))
    rows = pb // pack
    xp = x.reshape(rows, kin)  # contiguous reshape: 8 rows -> one 128-lane row

    # Packed-row tile: biggest that (a) respects tm, (b) leaves >= 2 grid steps
    # when possible (v7x megacore), (c) keeps the double-buffered working set
    # comfortably inside every generation's scoped VMEM.
    if rows <= 8:
        tile = rows
    else:
        req = max(8, (max(tm, pack) // pack) // 8 * 8)
        half = _round_up(-(-rows // 2), 8)            # ceil(rows/2), 8-aligned
        bpr = kin * x.dtype.itemsize + out_p * 4      # x + out bytes / packed row
        cap = max(8, ((24 << 20) // (2 * bpr)) // 8 * 8)
        tile = max(8, min(req, half, cap))
    grid = (pl.cdiv(rows, tile),)  # ragged last block handled by Pallas masking

    w_bytes = sum(int(p.size) * p.dtype.itemsize for p in packed.values())
    need = 2 * tile * (kin * x.dtype.itemsize + out_p * 4) + w_bytes + (2 << 20)
    ckw = dict(dimension_semantics=("parallel",))
    if need > (12 << 20):  # only needed past v5e's 16 MiB scoped default
        ckw["vmem_limit_bytes"] = int(min(need, 30 << 20))

    def resident(shape):
        # Same block every grid step -> DMA'd once, stays resident in VMEM.
        return pl.BlockSpec(shape, lambda i: (0, 0))

    out = pl.pallas_call(
        mlp_kernel,
        out_shape=jax.ShapeDtypeStruct((rows, out_p), jnp.float32),
        grid_spec=pltpu.PrefetchScalarGridSpec(
            num_scalar_prefetch=0,
            grid=grid,
            in_specs=[
                pl.BlockSpec((tile, kin), lambda i: (i, 0)),   # packed x tile
                resident(packed["w1"].shape), resident(packed["b1"].shape),
                resident(packed["w2"].shape), resident(packed["b2"].shape),
                resident(packed["w3"].shape), resident(packed["b3"].shape),
            ],
            out_specs=pl.BlockSpec((tile, out_p), lambda i: (i, 0)),
        ),
        compiler_params=pltpu.CompilerParams(**ckw),
        cost_estimate=pl.CostEstimate(
            flops=2 * rows * (kin * hid_p + hid_p * hid_p + hid_p * out_p),
            transcendentals=0,
            bytes_accessed=rows * kin * x.dtype.itemsize
            + rows * out_p * 4 + w_bytes,
        ),
    )(xp, packed["w1"], packed["b1"], packed["w2"], packed["b2"],
      packed["w3"], packed["b3"])

    # (rows, pack*nb_out) -> (pb, nb_out): contiguous reshape, then drop pad rows.
    return out.reshape(pb, nb_out)[:batch]


def init_params(key, nb_inputs, nb_outputs, hidden=10):
    """Deterministic init mimicking nn.Linear's U(-1/sqrt(fan_in), 1/sqrt(fan_in))."""
    def linear(k, fan_in, fan_out):
        kw, kb = jax.random.split(k)
        bound = 1.0 / jnp.sqrt(jnp.float32(fan_in))
        w = jax.random.uniform(kw, (fan_in, fan_out), jnp.float32, -bound, bound)
        b = jax.random.uniform(kb, (1, fan_out), jnp.float32, -bound, bound)
        return w, b

    k1, k2, k3 = jax.random.split(key, 3)
    w1, b1 = linear(k1, nb_inputs, hidden)
    w2, b2 = linear(k2, hidden, hidden)
    w3, b3 = linear(k3, hidden, nb_outputs)
    return dict(w1=w1, b1=b1, w2=w2, b2=b2, w3=w3, b3=b3)


# TODO(synk): MSELoss / SGD(momentum) training machinery from the module is not
# part of forward() and is left to the host-side JAX training loop.

if __name__ == "__main__":
    key = jax.random.PRNGKey(0)
    k_x, k_p = jax.random.split(key)

    batch, nb_inputs, nb_outputs = 200, 16, 4
    x = jax.random.normal(k_x, (batch, nb_inputs), jnp.float32)
    params = init_params(k_p, nb_inputs, nb_outputs)

    # Pure-JAX reference (highest-precision f32 matmuls).
    def ref(x, p):
        hi = jax.lax.Precision.HIGHEST
        h = jnp.maximum(jnp.dot(x, p["w1"], precision=hi) + p["b1"], 0.0)
        h = jnp.maximum(jnp.dot(h, p["w2"], precision=hi) + p["b2"], 0.0)
        return jnp.dot(h, p["w3"], precision=hi) + p["b3"]

    expected = ref(x, params)

    # f32-compute path: 25 packed rows -> 2 grid steps (ragged 2nd block).
    packed_f32 = pack_params(params, compute_dtype=jnp.float32)
    out = net_forward(x, packed_f32)
    jax.block_until_ready(out)
    assert out.shape == (batch, nb_outputs)
    assert jnp.allclose(out, expected, atol=2e-2, rtol=2e-2), "f32 path mismatch"

    # Small tile: 4 grid steps with a ragged final block (25 = 3*8 + 1).
    out_tiled = net_forward(x, packed_f32, tm=64)
    jax.block_until_ready(out_tiled)
    assert jnp.allclose(out_tiled, expected, atol=2e-2, rtol=2e-2), "tiled mismatch"

    # bf16-compute path (perf default): single-pass MXU, f32 accumulation.
    packed_bf16 = pack_params(params)
    out_bf16 = net_forward(x, packed_bf16)
    jax.block_until_ready(out_bf16)
    assert out_bf16.shape == (batch, nb_outputs)
    assert jnp.allclose(out_bf16, expected, atol=1e-1, rtol=1e-1), "bf16 mismatch"

    # Batch not a multiple of the packing factor (tiny pad-to-8 fallback path).
    x_odd = x[:52]
    out_odd = net_forward(x_odd, packed_f32)
    jax.block_until_ready(out_odd)
    assert out_odd.shape == (52, nb_outputs)
    assert jnp.allclose(out_odd, expected[:52], atol=2e-2, rtol=2e-2), "odd batch"

    print("KERNEL_OK")
</pallas_src>

<mosaic_0001>
module attributes {stable_mosaic.version = 11 : i64} {
  func.func @mlp_kernel(%arg0: i32, %arg1: memref<16x128xf32, #tpu.memory_space<vmem>>, %arg2: memref<128x80xf32, #tpu.memory_space<vmem>>, %arg3: memref<1x80xf32, #tpu.memory_space<vmem>>, %arg4: memref<80x80xf32, #tpu.memory_space<vmem>>, %arg5: memref<1x80xf32, #tpu.memory_space<vmem>>, %arg6: memref<80x32xf32, #tpu.memory_space<vmem>>, %arg7: memref<1x32xf32, #tpu.memory_space<vmem>>, %arg8: memref<16x32xf32, #tpu.memory_space<vmem>>) attributes {dimension_semantics = [#tpu.dimension_semantics<parallel>], iteration_bounds = array<i64: 2>, scalar_prefetch = 0 : i64, scratch_operands = 0 : i64, tpu.core_type = #tpu.core_type<tc>, window_params = [{transform_indices = @transform_0, window_bounds = array<i64: 16, 128>}, {pipeline_mode = #tpu.pipeline_mode<synchronous>, transform_indices = @transform_1, window_bounds = array<i64: 128, 80>}, {pipeline_mode = #tpu.pipeline_mode<synchronous>, transform_indices = @transform_2, window_bounds = array<i64: 1, 80>}, {pipeline_mode = #tpu.pipeline_mode<synchronous>, transform_indices = @transform_3, window_bounds = array<i64: 80, 80>}, {pipeline_mode = #tpu.pipeline_mode<synchronous>, transform_indices = @transform_4, window_bounds = array<i64: 1, 80>}, {pipeline_mode = #tpu.pipeline_mode<synchronous>, transform_indices = @transform_5, window_bounds = array<i64: 80, 32>}, {pipeline_mode = #tpu.pipeline_mode<synchronous>, transform_indices = @transform_6, window_bounds = array<i64: 1, 32>}, {transform_indices = @transform_7, window_bounds = array<i64: 16, 32>}]} {
    %c0 = arith.constant 0 : index
    %c0_0 = arith.constant 0 : index
    %0 = vector.load %arg1[%c0, %c0_0] : memref<16x128xf32, #tpu.memory_space<vmem>>, vector<16x128xf32>
    %c0_1 = arith.constant 0 : index
    %c0_2 = arith.constant 0 : index
    %1 = vector.load %arg2[%c0_1, %c0_2] : memref<128x80xf32, #tpu.memory_space<vmem>>, vector<128x80xf32>
    %cst = arith.constant dense<0.000000e+00> : vector<16x80xf32>
    %2 = tpu.matmul %0, %1, %cst {dimension_numbers = #tpu.dot_dimension_numbers<[1], [0], [0], [1], [0, 0, 1, 1], [], []>} : vector<16x128xf32>, vector<128x80xf32>, vector<16x80xf32> -> vector<16x80xf32>
    %c0_3 = arith.constant 0 : index
    %c0_4 = arith.constant 0 : index
    %3 = vector.load %arg3[%c0_3, %c0_4] : memref<1x80xf32, #tpu.memory_space<vmem>>, vector<1x80xf32>
    %4 = vector.broadcast %3 : vector<1x80xf32> to vector<16x80xf32>
    %5 = arith.addf %2, %4 : vector<16x80xf32>
    %cst_5 = arith.constant 0.000000e+00 : f32
    %6 = vector.broadcast %cst_5 : f32 to vector<16x80xf32>
    %7 = arith.maximumf %5, %6 : vector<16x80xf32>
    %c0_6 = arith.constant 0 : index
    %c0_7 = arith.constant 0 : index
    %8 = vector.load %arg4[%c0_6, %c0_7] : memref<80x80xf32, #tpu.memory_space<vmem>>, vector<80x80xf32>
    %cst_8 = arith.constant dense<0.000000e+00> : vector<16x80xf32>
    %9 = tpu.matmul %7, %8, %cst_8 {dimension_numbers = #tpu.dot_dimension_numbers<[1], [0], [0], [1], [0, 0, 1, 1], [], []>} : vector<16x80xf32>, vector<80x80xf32>, vector<16x80xf32> -> vector<16x80xf32>
    %c0_9 = arith.constant 0 : index
    %c0_10 = arith.constant 0 : index
    %10 = vector.load %arg5[%c0_9, %c0_10] : memref<1x80xf32, #tpu.memory_space<vmem>>, vector<1x80xf32>
    %11 = vector.broadcast %10 : vector<1x80xf32> to vector<16x80xf32>
    %12 = arith.addf %9, %11 : vector<16x80xf32>
    %cst_11 = arith.constant 0.000000e+00 : f32
    %13 = vector.broadcast %cst_11 : f32 to vector<16x80xf32>
    %14 = arith.maximumf %12, %13 : vector<16x80xf32>
    %c0_12 = arith.constant 0 : index
    %c0_13 = arith.constant 0 : index
    %15 = vector.load %arg6[%c0_12, %c0_13] : memref<80x32xf32, #tpu.memory_space<vmem>>, vector<80x32xf32>
    %cst_14 = arith.constant dense<0.000000e+00> : vector<16x32xf32>
    %16 = tpu.matmul %14, %15, %cst_14 {dimension_numbers = #tpu.dot_dimension_numbers<[1], [0], [0], [1], [0, 0, 1, 1], [], []>} : vector<16x80xf32>, vector<80x32xf32>, vector<16x32xf32> -> vector<16x32xf32>
    %c0_15 = arith.constant 0 : index
    %c0_16 = arith.constant 0 : index
    %17 = vector.load %arg7[%c0_15, %c0_16] : memref<1x32xf32, #tpu.memory_space<vmem>>, vector<1x32xf32>
    %18 = vector.broadcast %17 : vector<1x32xf32> to vector<16x32xf32>
    %19 = arith.addf %16, %18 : vector<16x32xf32>
    %c0_17 = arith.constant 0 : index
    %c0_18 = arith.constant 0 : index
    %20 = vector.load %arg8[%c0_17, %c0_18] : memref<16x32xf32, #tpu.memory_space<vmem>>, vector<16x32xf32>
    tpu.vector_store %arg8[%c0_17, %c0_18], %19 {strides = array<i32>} : memref<16x32xf32, #tpu.memory_space<vmem>>, vector<16x32xf32>,
    return
  }
  func.func @transform_0(%arg0: i32) -> (i32, i32) {
    %c0_i32 = arith.constant 0 : i32
    %c0_i32_0 = arith.constant 0 : i32
    return %arg0, %c0_i32 : i32, i32
  }
  func.func @transform_1(%arg0: i32) -> (i32, i32) {
    %c0_i32 = arith.constant 0 : i32
    %c0_i32_0 = arith.constant 0 : i32
    %c0_i32_1 = arith.constant 0 : i32
    return %c0_i32, %c0_i32_0 : i32, i32
  }
  func.func @transform_2(%arg0: i32) -> (i32, i32) {
    %c0_i32 = arith.constant 0 : i32
    %c0_i32_0 = arith.constant 0 : i32
    %c0_i32_1 = arith.constant 0 : i32
    return %c0_i32, %c0_i32_0 : i32, i32
  }
  func.func @transform_3(%arg0: i32) -> (i32, i32) {
    %c0_i32 = arith.constant 0 : i32
    %c0_i32_0 = arith.constant 0 : i32
    %c0_i32_1 = arith.constant 0 : i32
    return %c0_i32, %c0_i32_0 : i32, i32
  }
  func.func @transform_4(%arg0: i32) -> (i32, i32) {
    %c0_i32 = arith.constant 0 : i32
    %c0_i32_0 = arith.constant 0 : i32
    %c0_i32_1 = arith.constant 0 : i32
    return %c0_i32, %c0_i32_0 : i32, i32
  }
  func.func @transform_5(%arg0: i32) -> (i32, i32) {
    %c0_i32 = arith.constant 0 : i32
    %c0_i32_0 = arith.constant 0 : i32
    %c0_i32_1 = arith.constant 0 : i32
    return %c0_i32, %c0_i32_0 : i32, i32
  }
  func.func @transform_6(%arg0: i32) -> (i32, i32) {
    %c0_i32 = arith.constant 0 : i32
    %c0_i32_0 = arith.constant 0 : i32
    %c0_i32_1 = arith.constant 0 : i32
    return %c0_i32, %c0_i32_0 : i32, i32
  }
  func.func @transform_7(%arg0: i32) -> (i32, i32) {
    %c0_i32 = arith.constant 0 : i32
    %c0_i32_0 = arith.constant 0 : i32
    return %arg0, %c0_i32 : i32, i32
  }
}

</mosaic_0001>

<llo_original>
// kernel: net_forward.1
$region0: #{net_forward.1}
  #allocation0 [shape = 'u32[]', space=smem, size = 0x4, offset = 0x4, fixed_abs, tag = 'smem constant byte address 0x4 - core index']
  #allocation1 [shape = 'u32[72,128]{1,0:T(1,128)}', space=vmem, size = 0x9000, scoped, tag = 'internal scratch']
  %s0 = inlined_call_operand.vmem [shape: f32[25,128], index: 0, kind: input, shape index: {}]
  %s1 = inlined_call_operand.vmem [shape: f32[128,80], index: 1, kind: input, shape index: {}]
  %s2 = inlined_call_operand.vmem [shape: f32[1,80], index: 2, kind: input, shape index: {}]
  %s3 = inlined_call_operand.vmem [shape: f32[80,80], index: 3, kind: input, shape index: {}]
  %s4 = inlined_call_operand.vmem [shape: f32[1,80], index: 4, kind: input, shape index: {}]
  %s5 = inlined_call_operand.vmem [shape: f32[80,32], index: 5, kind: input, shape index: {}]
  %s6 = inlined_call_operand.vmem [shape: f32[1,32], index: 6, kind: input, shape index: {}]
  %s7 = inlined_call_operand.vmem [shape: f32[25,32], index: 7, kind: output, shape index: {}]
  %s8 = sld [smem:[#allocation0]]
  $region61: #{net_forward.1} parent=0
    _
  %s10 = ssub.s32 1, %s8
  %s11 = scalar_select 0, %s10, %s8
  loop: start=0, step=1, limit=4
  $region2: #{net_forward.1} parent=0 // loop_pre_header
    _
  $region3: #{net_forward.1} parent=0 // loop_header
    %s13 = sphi 0, %s17
    %p14 = scmp.ge.s32.totalorder %s13, 4
    %s23 = sphi 0, %s25
    %s26 = sphi 0, %s23
    %s27 = sphi 0, %s26
    %s43 = sphi 0, %s27
    %s47 = sphi 0, %s47
    %s49 = sphi 0, %s47
    %s50 = sphi 0, %s49
    %s64 = sphi 0, %s50
    %s68 = sphi 0, %s68
    %s70 = sphi 0, %s68
    %s71 = sphi 0, %s70
    %s85 = sphi 0, %s71
    %s89 = sphi 0, %s89
    %s91 = sphi 0, %s89
    %s92 = sphi 0, %s91
    %s106 = sphi 0, %s92
    %s110 = sphi 0, %s110
    %s112 = sphi 0, %s110
    %s113 = sphi 0, %s112
    %s127 = sphi 0, %s113
    %s131 = sphi 0, %s131
    %s133 = sphi 0, %s131
    %s134 = sphi 0, %s133
    %s148 = sphi 0, %s134
    %s152 = sphi 0, %s152
    %s154 = sphi 0, %s152
    %s155 = sphi 0, %s154
    %s169 = sphi 0, %s155
    %s175 = sphi 0, %s177
    %s178 = sphi 0, %s175
    %s179 = sphi 0, %s178
    %s195 = sphi 0, %s179
  $region4: #{net_forward.1} parent=0 // loop_header_branch
    %16 = sbr.rel (%p14) target = $region8
  $region5: #{net_forward.1} parent=0 // loop_body
    %s18 = ssub.s32 %s13, 1
    %s19 = ssub.s32 %s13, 2
    %s20 = sadd.s32 %s13, 1
    %s21 = ssub.s32 %s13, %s20
    %p22 = scmp.eq.s32.totalorder %s21, 0
    %s24 = sadd.s32 %s23, 1
    %s25 = scalar_select %p22, %s23, %s24
    %p28 = pneg %p22
    %p29 = scmp.eq.s32.totalorder %s13, 1
    %p30 = por %p28, %p29
    %p31 = scmp.ne.s32.totalorder %s23, %s26
    %p32 = scmp.eq.s32.totalorder %s13, 0
    %p33 = por %p31, %p32
    %p34 = scmp.ne.s32.totalorder %s23, %s26
    %p35 = scmp.eq.s32.totalorder %s18, 1
    %p36 = por %p34, %p35
    %p37 = scmp.ne.s32.totalorder %s26, %s27
    %p38 = scmp.eq.s32.totalorder %s18, 0
    %p39 = por %p37, %p38
    %p40 = scmp.ne.s32.totalorder %s26, %s27
    %p41 = scmp.eq.s32.totalorder %s19, 1
    %p42 = por %p40, %p41
    %p44 = scmp.ne.s32.totalorder %s27, %s43
    %p45 = scmp.eq.s32.totalorder %s19, 0
    %p46 = por %p44, %p45
    %s48 = sadd.s32 %s47, 1
    %p51 = scmp.eq.s32.totalorder %s13, 1
    %p52 = scmp.ne.s32.totalorder %s47, %s49
    %p53 = scmp.eq.s32.totalorder %s13, 0
    %p54 = por %p52, %p53
    %p55 = scmp.ne.s32.totalorder %s47, %s49
    %p56 = scmp.eq.s32.totalorder %s18, 1
    %p57 = por %p55, %p56
    %p58 = scmp.ne.s32.totalorder %s49, %s50
    %p59 = scmp.eq.s32.totalorder %s18, 0
    %p60 = por %p58, %p59
    %p61 = scmp.ne.s32.totalorder %s49, %s50
    %p62 = scmp.eq.s32.totalorder %s19, 1
    %p63 = por %p61, %p62
    %p65 = scmp.ne.s32.totalorder %s50, %s64
    %p66 = scmp.eq.s32.totalorder %s19, 0
    %p67 = por %p65, %p66
    %s69 = sadd.s32 %s68, 1
    %p72 = scmp.eq.s32.totalorder %s13, 1
    %p73 = scmp.ne.s32.totalorder %s68, %s70
    %p74 = scmp.eq.s32.totalorder %s13, 0
    %p75 = por %p73, %p74
    %p76 = scmp.ne.s32.totalorder %s68, %s70
    %p77 = scmp.eq.s32.totalorder %s18, 1
    %p78 = por %p76, %p77
    %p79 = scmp.ne.s32.totalorder %s70, %s71
    %p80 = scmp.eq.s32.totalorder %s18, 0
    %p81 = por %p79, %p80
    %p82 = scmp.ne.s32.totalorder %s70, %s71
    %p83 = scmp.eq.s32.totalorder %s19, 1
    %p84 = por %p82, %p83
    %p86 = scmp.ne.s32.totalorder %s71, %s85
    %p87 = scmp.eq.s32.totalorder %s19, 0
    %p88 = por %p86, %p87
    %s90 = sadd.s32 %s89, 1
    %p93 = scmp.eq.s32.totalorder %s13, 1
    %p94 = scmp.ne.s32.totalorder %s89, %s91
    %p95 = scmp.eq.s32.totalorder %s13, 0
    %p96 = por %p94, %p95
    %p97 = scmp.ne.s32.totalorder %s89, %s91
    %p98 = scmp.eq.s32.totalorder %s18, 1
    %p99 = por %p97, %p98
    %p100 = scmp.ne.s32.totalorder %s91, %s92
    %p101 = scmp.eq.s32.totalorder %s18, 0
    %p102 = por %p100, %p101
    %p103 = scmp.ne.s32.totalorder %s91, %s92
    %p104 = scmp.eq.s32.totalorder %s19, 1
    %p105 = por %p103, %p104
    %p107 = scmp.ne.s32.totalorder %s92, %s106
    %p108 = scmp.eq.s32.totalorder %s19, 0
    %p109 = por %p107, %p108
    %s111 = sadd.s32 %s110, 1
    %p114 = scmp.eq.s32.totalorder %s13, 1
    %p115 = scmp.ne.s32.totalorder %s110, %s112
    %p116 = scmp.eq.s32.totalorder %s13, 0
    %p117 = por %p115, %p116
    %p118 = scmp.ne.s32.totalorder %s110, %s112
    %p119 = scmp.eq.s32.totalorder %s18, 1
    %p120 = por %p118, %p119
    %p121 = scmp.ne.s32.totalorder %s112, %s113
    %p122 = scmp.eq.s32.totalorder %s18, 0
    %p123 = por %p121, %p122
    %p124 = scmp.ne.s32.totalorder %s112, %s113
    %p125 = scmp.eq.s32.totalorder %s19, 1
    %p126 = por %p124, %p125
    %p128 = scmp.ne.s32.totalorder %s113, %s127
    %p129 = scmp.eq.s32.totalorder %s19, 0
    %p130 = por %p128, %p129
    %s132 = sadd.s32 %s131, 1
    %p135 = scmp.eq.s32.totalorder %s13, 1
    %p136 = scmp.ne.s32.totalorder %s131, %s133
    %p137 = scmp.eq.s32.totalorder %s13, 0
    %p138 = por %p136, %p137
    %p139 = scmp.ne.s32.totalorder %s131, %s133
    %p140 = scmp.eq.s32.totalorder %s18, 1
    %p141 = por %p139, %p140
    %p142 = scmp.ne.s32.totalorder %s133, %s134
    %p143 = scmp.eq.s32.totalorder %s18, 0
    %p144 = por %p142, %p143
    %p145 = scmp.ne.s32.totalorder %s133, %s134
    %p146 = scmp.eq.s32.totalorder %s19, 1
    %p147 = por %p145, %p146
    %p149 = scmp.ne.s32.totalorder %s134, %s148
    %p150 = scmp.eq.s32.totalorder %s19, 0
    %p151 = por %p149, %p150
    %s153 = sadd.s32 %s152, 1
    %p156 = scmp.eq.s32.totalorder %s13, 1
    %p157 = scmp.ne.s32.totalorder %s152, %s154
    %p158 = scmp.eq.s32.totalorder %s13, 0
    %p159 = por %p157, %p158
    %p160 = scmp.ne.s32.totalorder %s152, %s154
    %p161 = scmp.eq.s32.totalorder %s18, 1
    %p162 = por %p160, %p161
    %p163 = scmp.ne.s32.totalorder %s154, %s155
    %p164 = scmp.eq.s32.totalorder %s18, 0
    %p165 = por %p163, %p164
    %p166 = scmp.ne.s32.totalorder %s154, %s155
    %p167 = scmp.eq.s32.totalorder %s19, 1
    %p168 = por %p166, %p167
    %p170 = scmp.ne.s32.totalorder %s155, %s169
    %p171 = scmp.eq.s32.totalorder %s19, 0
    %p172 = por %p170, %p171
    %s173 = ssub.s32 %s13, %s20
    %p174 = scmp.eq.s32.totalorder %s173, 0
    %s176 = sadd.s32 %s175, 1
    %s177 = scalar_select %p174, %s175, %s176
    %p180 = pneg %p174
    %p181 = scmp.eq.s32.totalorder %s13, 1
    %p182 = por %p180, %p181
    %p183 = scmp.ne.s32.totalorder %s175, %s178
    %p184 = scmp.eq.s32.totalorder %s13, 0
    %p185 = por %p183, %p184
    %p186 = scmp.ne.s32.totalorder %s175, %s178
    %p187 = scmp.eq.s32.totalorder %s18, 1
    %p188 = por %p186, %p187
    %p189 = scmp.ne.s32.totalorder %s178, %s179
    %p190 = scmp.eq.s32.totalorder %s18, 0
    %p191 = por %p189, %p190
    %p192 = scmp.ne.s32.totalorder %s178, %s179
    %p193 = scmp.eq.s32.totalorder %s19, 1
    %p194 = por %p192, %p193
    %p196 = scmp.ne.s32.totalorder %s179, %s195
    %p197 = scmp.eq.s32.totalorder %s19, 0
    %p198 = por %p196, %p197
    %p199 = scmp.le.s32.totalorder 1, %s13
    %p200 = scmp.lt.s32.totalorder %s13, 3
    %p201 = pnand %p199, %p200
    %p202 = pneg %p201
    // Predicated region
    $region9: #{net_forward.1} parent=5 // pred_check
      _
    $region10: #{net_forward.1} parent=5 // pred_check_branch
      %204 = sbr.rel (%p201) target = $region12
    $region11: #{net_forward.1} parent=5 // pred_region
      %s205 = ssub.s32 %s13, 1
      // Predicated region
      $region13: #{net_forward.1} parent=11 // pred_check
        %p206 = pneg %p60
      $region14: #{net_forward.1} parent=11 // pred_check_branch
        %208 = sbr.rel (%p206) target = $region16
      $region15: #{net_forward.1} parent=11 // pred_region
        _
      $region16: #{net_forward.1} parent=11 // pred_fallthru
        _
      // Predicated region
      $region17: #{net_forward.1} parent=11 // pred_check
        %p209 = pneg %p81
      $region18: #{net_forward.1} parent=11 // pred_check_branch
        %211 = sbr.rel (%p209) target = $region20
      $region19: #{net_forward.1} parent=11 // pred_region
        _
      $region20: #{net_forward.1} parent=11 // pred_fallthru
        _
      // Predicated region
      $region21: #{net_forward.1} parent=11 // pred_check
        %p212 = pneg %p102
      $region22: #{net_forward.1} parent=11 // pred_check_branch
        %214 = sbr.rel (%p212) target = $region24
      $region23: #{net_forward.1} parent=11 // pred_region
        _
      $region24: #{net_forward.1} parent=11 // pred_fallthru
        _
      // Predicated region
      $region25: #{net_forward.1} parent=11 // pred_check
        %p215 = pneg %p123
      $region26: #{net_forward.1} parent=11 // pred_check_branch
        %217 = sbr.rel (%p215) target = $region28
      $region27: #{net_forward.1} parent=11 // pred_region
        _
      $region28: #{net_forward.1} parent=11 // pred_fallthru
        _
      // Predicated region
      $region29: #{net_forward.1} parent=11 // pred_check
        %p218 = pneg %p144
      $region30: #{net_forward.1} parent=11 // pred_check_branch
        %220 = sbr.rel (%p218) target = $region32
      $region31: #{net_forward.1} parent=11 // pred_region
        _
      $region32: #{net_forward.1} parent=11 // pred_fallthru
        _
      // Predicated region
      $region33: #{net_forward.1} parent=11 // pred_check
        %p221 = pneg %p165
      $region34: #{net_forward.1} parent=11 // pred_check_branch
        %223 = sbr.rel (%p221) target = $region36
      $region35: #{net_forward.1} parent=11 // pred_region
        _
      $region36: #{net_forward.1} parent=11 // pred_fallthru
        _
    $region12: #{net_forward.1} parent=5 // pred_fallthru
      _
    %p224 = scmp.lt.s32.totalorder %s13, 2
    // Predicated region
    $region37: #{net_forward.1} parent=5 // pred_check
      %p225 = pneg %p224
    $region38: #{net_forward.1} parent=5 // pred_check_branch
      %227 = sbr.rel (%p225) target = $region40
    $region39: #{net_forward.1} parent=5 // pred_region
      // Predicated region
      $region41: #{net_forward.1} parent=39 // pred_check
        %p228 = pneg %p33
      $region42: #{net_forward.1} parent=39 // pred_check_branch
        %230 = sbr.rel (%p228) target = $region44
      $region43: #{net_forward.1} parent=39 // pred_region
        %s231 = smul.u32 2, %s13
        %p232 = scmp.lt.s32.totalorder %s231, 3
        %s233 = scalar_select %p232, %s231, 3
        %s234 = smul.addr %s233, 8
        %s235 = scalar_lea.vmem %s0, %s234
        %s236 = smul.u32 2, %s13
      $region44: #{net_forward.1} parent=39 // pred_fallthru
        _
    $region40: #{net_forward.1} parent=5 // pred_fallthru
      _
    %p237 = scmp.le.s32.totalorder 1, %s13
    %p238 = scmp.lt.s32.totalorder %s13, 3
    %p239 = pnand %p237, %p238
    %p240 = pneg %p239
    // Predicated region
    $region45: #{net_forward.1} parent=5 // pred_check
      _
    $region46: #{net_forward.1} parent=5 // pred_check_branch
      %242 = sbr.rel (%p239) target = $region48
    $region47: #{net_forward.1} parent=5 // pred_region
      %s243 = ssub.s32 %s13, 1
      %s244 = smul.u32 2, %s18
      %p245 = scmp.lt.s32.totalorder %s244, 3
      %s246 = scalar_select %p245, %s244, 3
      %s247 = smul.addr %s246, 8
      %s248 = scalar_lea.vmem %s0, %s247
      %p249 = pneg %p39
      %p250 = pneg %p36
      %p251 = pneg %p60
      %p252 = pneg %p57
      %p253 = pneg %p81
      %p254 = pneg %p78
      %p255 = pneg %p102
      %p256 = pneg %p99
      %p257 = pneg %p123
      %p258 = pneg %p120
      %p259 = pneg %p144
      %p260 = pneg %p141
      %p261 = pneg %p165
      %p262 = pneg %p162
      %p263 = pneg %p191
      %p264 = pneg %p188
      %s265 = smul.u32 2, %s18
      %p266 = scmp.lt.s32.totalorder %s265, 3
      %s267 = scalar_select %p266, %s265, 3
      %s268 = smul.addr %s267, 8
      %s269 = scalar_lea.vmem %s7, %s268
      %s270 = smul.u32 2, %s18
      %p271 = scmp.lt.s32.totalorder %s270, 3
      %s272 = scalar_select %p271, %s270, 3
      %s273 = smul.addr %s272, 8
      %s274 = scalar_lea.vmem %s0, %s273
      %s275 = smul.u32 2, %s18
      %s276 = smul.u32 2, %s18
      %p277 = scmp.lt.s32.totalorder %s276, 3
      %s278 = scalar_select %p277, %s276, 3
      %s279 = smul.addr %s278, 8
      %s280 = scalar_lea.vmem %s7, %s279
      %s281 = smul.u32 2, %s18
      %v282 = vld [vmem:[%s274] sm:$0xff]
      %v283 = vld [vmem:[%s274 + $0x8] sm:$0xff]
      %v284 = vld [vmem:[%s1] sm:$0xff]
      %v285 = vld [vmem:[%s1 + $0x8] sm:$0xff]
      %v286 = vld [vmem:[%s1 + $0x10] sm:$0xff]
      %v287 = vld [vmem:[%s1 + $0x18] sm:$0xff]
      %v288 = vld [vmem:[%s1 + $0x20] sm:$0xff]
      %v289 = vld [vmem:[%s1 + $0x28] sm:$0xff]
      %v290 = vld [vmem:[%s1 + $0x30] sm:$0xff]
      %v291 = vld [vmem:[%s1 + $0x38] sm:$0xff]
      %v292 = vld [vmem:[%s1 + $0x40] sm:$0xff]
      %v293 = vld [vmem:[%s1 + $0x48] sm:$0xff]
      %v294 = vld [vmem:[%s1 + $0x50] sm:$0xff]
      %v295 = vld [vmem:[%s1 + $0x58] sm:$0xff]
      %v296 = vld [vmem:[%s1 + $0x60] sm:$0xff]
      %v297 = vld [vmem:[%s1 + $0x68] sm:$0xff]
      %v298 = vld [vmem:[%s1 + $0x70] sm:$0xff]
      %v299 = vld [vmem:[%s1 + $0x78] sm:$0xff]
      %v300 = vld [vmem:[%s2] sm:$0x1]
      %v302 = vperm.slane %v300, 0
      %304 = vmatpush.msra.mxu0 %v299
      %305 = vmatpush.msra.mxu0 %v298
      %306 = vmatpush.msra.mxu0 %v297
      %307 = vmatpush.msra.mxu0 %v296
      %308 = vmatpush.msra.mxu0 %v295
      %309 = vmatpush.msra.mxu0 %v294
      %310 = vmatpush.msra.mxu0 %v293
      %311 = vmatpush.msra.mxu0 %v292
      %312 = vmatpush.msra.mxu0 %v291
      %313 = vmatpush.msra.mxu0 %v290
      %314 = vmatpush.msra.mxu0 %v289
      %315 = vmatpush.msra.mxu0 %v288
      %316 = vmatpush.msra.mxu0 %v287
      %317 = vmatpush.msra.mxu0 %v286
      %318 = vmatpush.msra.mxu0 %v285
      %319 = vmatpush.msra.mxu0 %v284
      %320 = vmatmul.f32.gmra.mxu0 %v282
      %v321 = vpop.f32.mrf.mxu0
      %v322 = vadd.f32 %v302, %v321
      %323 = vmatmul.f32.gmra.mxu0 %v283
      %v324 = vpop.f32.mrf.mxu0
      %v325 = vadd.f32 %v302, %v324
      %326 = vdwg.mxu0
      %v327 = vmax.f32 %v322, 0.0
      %v328 = vmax.f32 %v325, 0.0
      %v329 = vld [vmem:[%s3] sm:$0xff]
      %v330 = vld [vmem:[%s3 + $0x8] sm:$0xff]
      %v331 = vld [vmem:[%s3 + $0x10] sm:$0xff]
      %v332 = vld [vmem:[%s3 + $0x18] sm:$0xff]
      %v333 = vld [vmem:[%s3 + $0x20] sm:$0xff]
      %v334 = vld [vmem:[%s3 + $0x28] sm:$0xff]
      %v335 = vld [vmem:[%s3 + $0x30] sm:$0xff]
      %v336 = vld [vmem:[%s3 + $0x38] sm:$0xff]
      %v337 = vld [vmem:[%s3 + $0x40] sm:$0xff]
      %v338 = vld [vmem:[%s3 + $0x48] sm:$0xff]
      %v339 = vld [vmem:[%s4] sm:$0x1]
      %v341 = vperm.slane %v339, 0
      %vm343 = vcmask 654336
      %v345 = vsel %vm343, %v327, 0
      %v348 = vsel %vm343, %v328, 0
      %350 = vmatpush.msra.mxu0 0.0
      %351 = vmatpush.msra.mxu0 0.0
      %352 = vmatpush.msra.mxu0 0.0
      %353 = vmatpush.msra.mxu0 0.0
      %354 = vmatpush.msra.mxu0 0.0
      %355 = vmatpush.msra.mxu0 0.0
      %356 = vmatpush.msra.mxu0 %v338
      %357 = vmatpush.msra.mxu0 %v337
      %358 = vmatpush.msra.mxu0 %v336
      %359 = vmatpush.msra.mxu0 %v335
      %360 = vmatpush.msra.mxu0 %v334
      %361 = vmatpush.msra.mxu0 %v333
      %362 = vmatpush.msra.mxu0 %v332
      %363 = vmatpush.msra.mxu0 %v331
      %364 = vmatpush.msra.mxu0 %v330
      %365 = vmatpush.msra.mxu0 %v329
      %366 = vmatmul.f32.gmra.mxu0 %v345
      %v367 = vpop.f32.mrf.mxu0
      %v368 = vadd.f32 %v341, %v367
      %369 = vmatmul.f32.gmra.mxu0 %v348
      %v370 = vpop.f32.mrf.mxu0
      %v371 = vadd.f32 %v341, %v370
      %372 = vdwg.mxu0
      %v373 = vmax.f32 %v368, 0.0
      %v374 = vmax.f32 %v371, 0.0
      %v375 = vld [vmem:[%s5] sm:$0xff]
      %v376 = vld [vmem:[%s5 + $0x8] sm:$0xff]
      %v377 = vld [vmem:[%s5 + $0x10] sm:$0xff]
      %v378 = vld [vmem:[%s5 + $0x18] sm:$0xff]
      %v379 = vld [vmem:[%s5 + $0x20] sm:$0xff]
      %v380 = vld [vmem:[%s5 + $0x28] sm:$0xff]
      %v381 = vld [vmem:[%s5 + $0x30] sm:$0xff]
      %v382 = vld [vmem:[%s5 + $0x38] sm:$0xff]
      %v383 = vld [vmem:[%s5 + $0x40] sm:$0xff]
      %v384 = vld [vmem:[%s5 + $0x48] sm:$0xff]
      %v385 = vld [vmem:[%s6] sm:$0x1]
      %v387 = vperm.slane %v385, 0
      %v390 = vsel %vm343, %v373, 0
      %v393 = vsel %vm343, %v374, 0
      %395 = vmatpush.msra.mxu0 0.0
      %396 = vmatpush.msra.mxu0 0.0
      %397 = vmatpush.msra.mxu0 0.0
      %398 = vmatpush.msra.mxu0 0.0
      %399 = vmatpush.msra.mxu0 0.0
      %400 = vmatpush.msra.mxu0 0.0
      %401 = vmatpush.msra.mxu0 %v384
      %402 = vmatpush.msra.mxu0 %v383
      %403 = vmatpush.msra.mxu0 %v382
      %404 = vmatpush.msra.mxu0 %v381
      %405 = vmatpush.msra.mxu0 %v380
      %406 = vmatpush.msra.mxu0 %v379
      %407 = vmatpush.msra.mxu0 %v378
      %408 = vmatpush.msra.mxu0 %v377
      %409 = vmatpush.msra.mxu0 %v376
      %410 = vmatpush.msra.mxu0 %v375
      %411 = vmatmul.f32.gmra.mxu0 %v390
      %v412 = vpop.f32.mrf.mxu0
      %v413 = vadd.f32 %v387, %v412
      %414 = vmatmul.f32.gmra.mxu0 %v393
      %v415 = vpop.f32.mrf.mxu0
      %v416 = vadd.f32 %v387, %v415
      %417 = vdwg.mxu0
      %vm418 = vcmask 261120
      %419 = vst.msk [vmem:[%s280] sm:$0xff] %vm418, %v413
      %420 = vst.msk [vmem:[%s280 + $0x8] sm:$0xff] %vm418, %v416
      %s421 = smul.u32 2, %s18
      %p422 = scmp.lt.s32.totalorder %s421, 3
      %s423 = scalar_select %p422, %s421, 3
      %s424 = smul.addr %s423, 8
      %s425 = scalar_lea.vmem %s7, %s424
      // Predicated region
      $region49: #{net_forward.1} parent=47 // pred_check
        %p426 = pneg %p188
      $region50: #{net_forward.1} parent=47 // pred_check_branch
        %428 = sbr.rel (%p426) target = $region52
      $region51: #{net_forward.1} parent=47 // pred_region
        %s429 = smul.u32 2, %s18
      $region52: #{net_forward.1} parent=47 // pred_fallthru
        _
    $region48: #{net_forward.1} parent=5 // pred_fallthru
      _
    %p430 = scmp.le.s32.totalorder 2, %s13
    // Predicated region
    $region53: #{net_forward.1} parent=5 // pred_check
      %p431 = pneg %p430
    $region54: #{net_forward.1} parent=5 // pred_check_branch
      %433 = sbr.rel (%p431) target = $region56
    $region55: #{net_forward.1} parent=5 // pred_region
      %s434 = ssub.s32 %s13, 2
      // Predicated region
      $region57: #{net_forward.1} parent=55 // pred_check
        %p435 = pneg %p194
      $region58: #{net_forward.1} parent=55 // pred_check_branch
        %437 = sbr.rel (%p435) target = $region60
      $region59: #{net_forward.1} parent=55 // pred_region
        %s438 = smul.u32 2, %s19
        %p439 = scmp.lt.s32.totalorder %s438, 3
        %s440 = scalar_select %p439, %s438, 3
        %s441 = smul.addr %s440, 8
        %s442 = scalar_lea.vmem %s7, %s441
      $region60: #{net_forward.1} parent=55 // pred_fallthru
        _
    $region56: #{net_forward.1} parent=5 // pred_fallthru
      _
  $region6: #{net_forward.1} parent=0 // loop_footer
    %s17 = sadd.s32 1, %s13
  $region7: #{net_forward.1} parent=0 // loop_footer_branch
    %12 = sbr.rel target = $region3
  $region8: #{net_forward.1} parent=0 // loop_exit
    _

</llo_original>
